<compile_context>
chip_gen: v7x
topology: tpu7x:2x2x1
jax: 0.10.0
libtpu: 0.0.40
codegen_flags: <defaults>
</compile_context>

<pallas_src>
import functools

import jax
import jax.numpy as jnp
import numpy as np
from jax import lax
from jax.experimental import pallas as pl
from jax.experimental.pallas import tpu as pltpu


def _residual_kernel(feats_ref, coors_t_ref, w_ref, b_ref,
                     feats_out_ref, coors_t_out_ref):
    # feats_ref   : (TM, D)  row tile of flattened (B*N, D) feats
    # coors_t_ref : (C, TM)  coors transposed -> rows on the 128-lane axis
    # w_ref       : (D, D)   bf16, single-buffered (constant across grid)
    # b_ref       : (1, D)   f32,  single-buffered
    feats = feats_ref[...]
    d = feats.shape[-1]

    # fn: h = feats @ W + b.  MXU operands in bf16 (native rate), f32
    # accumulation; all elementwise math stays f32 (v5e has no bf16 VPU/EUP).
    h = jnp.dot(feats.astype(jnp.bfloat16), w_ref[...],
                preferred_element_type=jnp.float32)
    h = h + b_ref[...].astype(jnp.float32)                          # (TM, D)

    # Residual on feats: feats + tanh(h)   (tanh -> EUP slot).
    feats_out_ref[...] = (feats.astype(jnp.float32)
                          + jnp.tanh(h)).astype(feats_out_ref.dtype)

    # Per-row gate = sigmoid(mean_d h), produced lane-oriented ((1, TM)) via an
    # MXU contraction against ones so it broadcasts for free over the
    # lane-dense (C, TM) coors tile.
    # NOTE (perf review): this is the rhs-transposed dot form.  If bundle
    # dumps show Mosaic materialising a full (TM, D) -> (D, TM) XLU transpose
    # of h, fall back to jnp.sum(h, -1, keepdims=True) + one small
    # (TM, 1) -> (1, TM) relayout.  At the target shapes the kernel is
    # HBM-bound and even a full transpose (~TM*D/1024 vregs through 2 XLUs)
    # stays hidden under DMA time.
    ones = jnp.ones((8, d), jnp.float32)
    row_sums = lax.dot_general(ones, h, (((1,), (1,)), ((), ())),
                               preferred_element_type=jnp.float32)  # (8, TM)
    mean = row_sums[0:1, :] * (1.0 / d)                             # (1, TM)
    # Exact sigmoid (approx reciprocal dropped per perf review); exp overflow
    # for very negative means gives inf -> 1/inf = 0, the correct saturation.
    gate = pl.reciprocal(1.0 + jnp.exp(-mean))                      # (1, TM)

    coors_t = coors_t_ref[...].astype(jnp.float32)                  # (C, TM)
    coors_t_out_ref[...] = (coors_t + coors_t * gate).astype(
        coors_t_out_ref.dtype)


def _vmem_budget_bytes() -> int:
    """~75% of this chip's per-core VMEM (conservative v7x default if unknown)."""
    try:
        cap = int(pltpu.get_tpu_info().vmem_capacity_bytes)
    except Exception:
        cap = 64 << 20  # v7x per-TensorCore VMEM, the smallest current gen
    return max((cap * 3) // 4, 32 << 20)


def _plan_tile_rows(M: int, D: int, C: int, tile_m: int, budget: int) -> int:
    """Pick the static row-tile size tm."""
    # Per-row VMEM bytes of a grid step: feats in/out double-buffered f32,
    # coors^T in/out double-buffered f32, plus in-kernel temporaries
    # (h, tanh, bf16 cast of feats) that land in compiler-internal scratch.
    per_row = 4 * D * 4 + 4 * C * 4 + 3 * D * 4 + 2 * D + 64
    # Fixed: bf16 W (single-buffered), f32 b, (8, D) ones constant, slack.
    fixed = 2 * D * D + 4 * D + 32 * D + (1 << 20)
    cap_rows = max((budget - fixed) // per_row, 128)
    cap_rows = min(cap_rows, tile_m)
    if M < 256:
        # Too small to split into >=2 lane-aligned (128-multiple) tiles: use a
        # single full-extent block (full-extent blocks are exempt from the
        # (8, 128) divisibility constraint).
        return M
    # tm must be a multiple of 128 (lane axis of the (C, tm) coors^T blocks);
    # keep >=2 grid steps so both v7x TensorCores get work and the pipeline
    # overlaps DMA with compute (harmless on single-TC v5e/v6e).
    tm = min(cap_rows, M // 2)
    return max(128, (tm // 128) * 128)
    # TODO(synk): for D large enough that bf16 W alone blows the VMEM budget,
    # add a K-tiling grid axis (last, "arbitrary") with an f32 accumulator.


@functools.partial(jax.jit, static_argnames=("tm", "vmem_limit"))
def _residual_forward_impl(feats, coors, w, b, *, tm, vmem_limit):
    B, N, D = feats.shape
    C = coors.shape[-1]
    M = B * N
    num_steps = pl.cdiv(M, tm)

    feats2 = feats.reshape(M, D)
    # coors presented transposed (C, M): rows land on the 128-lane axis so the
    # coors stores are unmasked lane-dense vst instead of C/128 masked lanes.
    # TODO(synk): keep coors in (C, M) layout end-to-end in the caller to drop
    # these two small transpose copies.
    coors_t = jnp.swapaxes(coors.reshape(M, C), 0, 1)
    w_bf16 = w.astype(jnp.bfloat16)            # halves W HBM + VMEM bytes
    b2d = b.reshape(1, D).astype(jnp.float32)

    fb = feats.dtype.itemsize
    cb = coors.dtype.itemsize
    cost = pl.CostEstimate(
        flops=2 * M * D * D + 2 * M * D * 8 + 8 * M * D,
        transcendentals=M * D + M,             # tanh over h + exp in the gate
        bytes_accessed=2 * M * D * fb + 2 * M * C * cb + 2 * D * D + 4 * D,
    )

    grid_spec = pltpu.PrefetchScalarGridSpec(
        num_scalar_prefetch=0,
        grid=(num_steps,),
        in_specs=[
            pl.BlockSpec((tm, D), lambda i: (i, 0)),   # feats row tile
            pl.BlockSpec((C, tm), lambda i: (0, i)),   # coors^T, rows on lanes
            # Constant index_map -> single-buffer the replicated operands
            # (halves their VMEM reservation; W alone is D*D bytes in bf16).
            pl.BlockSpec((D, D), lambda i: (0, 0), pipeline_mode=pl.Buffered(1)),
            pl.BlockSpec((1, D), lambda i: (0, 0), pipeline_mode=pl.Buffered(1)),
        ],
        out_specs=[
            pl.BlockSpec((tm, D), lambda i: (i, 0)),
            pl.BlockSpec((C, tm), lambda i: (0, i)),
        ],
    )

    # Note: with a caller that donates feats at the jit boundary, add
    # input_output_aliases={0: 0} to reuse the feats HBM buffer for feats_out;
    # left off here because a non-donated input would force XLA to insert a
    # defensive copy (more HBM traffic than it saves).
    feats_out2, coors_out_t = pl.pallas_call(
        _residual_kernel,
        out_shape=(
            jax.ShapeDtypeStruct((M, D), feats.dtype),
            jax.ShapeDtypeStruct((C, M), coors.dtype),
        ),
        grid_spec=grid_spec,
        compiler_params=pltpu.CompilerParams(
            dimension_semantics=("parallel",),
            vmem_limit_bytes=vmem_limit,
        ),
        cost_estimate=cost,
    )(feats2, coors_t, w_bf16, b2d)

    feats_out = feats_out2.reshape(B, N, D)
    coors_out = jnp.swapaxes(coors_out_t, 0, 1).reshape(B, N, C)
    return feats_out, coors_out


def residual_forward(feats, coors, w, b, *, tile_m: int = 1024):
    """Residual(fn) forward; tiling planned per chip, no pad/slice copies."""
    B, N, D = feats.shape
    C = coors.shape[-1]
    budget = _vmem_budget_bytes()
    tm = _plan_tile_rows(B * N, D, C, tile_m, budget)
    return _residual_forward_impl(feats, coors, w, b, tm=tm, vmem_limit=budget)


def residual_reference(feats, coors, w, b):
    """Pure-JAX reference for the same Residual(fn) forward."""
    h = feats.astype(jnp.float32) @ w.astype(jnp.float32) + b
    feats_delta = jnp.tanh(h)
    gate = jax.nn.sigmoid(jnp.mean(h, axis=-1, keepdims=True))
    coors_delta = coors.astype(jnp.float32) * gate
    return (feats + feats_delta.astype(feats.dtype),
            coors + coors_delta.astype(coors.dtype))


if __name__ == "__main__":
    B, N, D, C = 2, 8, 32, 3

    key = jax.random.PRNGKey(0)
    k_f, k_c, k_w, k_b = jax.random.split(key, 4)

    feats = jax.random.normal(k_f, (B, N, D), dtype=jnp.float32)
    coors = jax.random.normal(k_c, (B, N, C), dtype=jnp.float32)
    # Deterministic synthetic parameters for the wrapped fn.
    w = jax.random.normal(k_w, (D, D), dtype=jnp.float32) * 0.1
    b = jax.random.normal(k_b, (D,), dtype=jnp.float32) * 0.1

    feats_out, coors_out = residual_forward(feats, coors, w, b)
    jax.block_until_ready((feats_out, coors_out))

    ref_feats, ref_coors = residual_reference(feats, coors, w, b)
    # bf16 MXU operands (with f32 accumulation) bound the error at ~2e-3 for
    # these magnitudes; the sigmoid gate itself is exact now.
    assert np.allclose(np.asarray(feats_out), np.asarray(ref_feats),
                       atol=1e-2, rtol=1e-2)
    assert np.allclose(np.asarray(coors_out), np.asarray(ref_coors),
                       atol=1e-2, rtol=1e-2)

    print("KERNEL_OK")
</pallas_src>

<mosaic_0001>
module attributes {stable_mosaic.version = 11 : i64} {
  func.func @_residual_kernel(%arg0: i32, %arg1: memref<16x32xf32, #tpu.memory_space<vmem>>, %arg2: memref<3x16xf32, #tpu.memory_space<vmem>>, %arg3: memref<32x32xbf16, #tpu.memory_space<vmem>>, %arg4: memref<1x32xf32, #tpu.memory_space<vmem>>, %arg5: memref<16x32xf32, #tpu.memory_space<vmem>>, %arg6: memref<3x16xf32, #tpu.memory_space<vmem>>) attributes {dimension_semantics = [#tpu.dimension_semantics<parallel>], iteration_bounds = array<i64: 1>, scalar_prefetch = 0 : i64, scratch_operands = 0 : i64, tpu.core_type = #tpu.core_type<tc>, window_params = [{transform_indices = @transform_0, window_bounds = array<i64: 16, 32>}, {transform_indices = @transform_1, window_bounds = array<i64: 3, 16>}, {pipeline_mode = #tpu.pipeline_mode<synchronous>, transform_indices = @transform_2, window_bounds = array<i64: 32, 32>}, {pipeline_mode = #tpu.pipeline_mode<synchronous>, transform_indices = @transform_3, window_bounds = array<i64: 1, 32>}, {transform_indices = @transform_4, window_bounds = array<i64: 16, 32>}, {transform_indices = @transform_5, window_bounds = array<i64: 3, 16>}]} {
    %c0 = arith.constant 0 : index
    %c0_0 = arith.constant 0 : index
    %0 = vector.load %arg1[%c0, %c0_0] : memref<16x32xf32, #tpu.memory_space<vmem>>, vector<16x32xf32>
    %1 = arith.truncf %0 : vector<16x32xf32> to vector<16x32xbf16>
    %c0_1 = arith.constant 0 : index
    %c0_2 = arith.constant 0 : index
    %2 = vector.load %arg3[%c0_1, %c0_2] : memref<32x32xbf16, #tpu.memory_space<vmem>>, vector<32x32xbf16>
    %cst = arith.constant dense<0.000000e+00> : vector<16x32xf32>
    %3 = tpu.matmul %1, %2, %cst {dimension_numbers = #tpu.dot_dimension_numbers<[1], [0], [0], [1], [0, 0, 1, 1], [], []>} : vector<16x32xbf16>, vector<32x32xbf16>, vector<16x32xf32> -> vector<16x32xf32>
    %c0_3 = arith.constant 0 : index
    %c0_4 = arith.constant 0 : index
    %4 = vector.load %arg4[%c0_3, %c0_4] : memref<1x32xf32, #tpu.memory_space<vmem>>, vector<1x32xf32>
    %5 = vector.broadcast %4 : vector<1x32xf32> to vector<16x32xf32>
    %6 = arith.addf %3, %5 : vector<16x32xf32>
    %7 = math.tanh %6 : vector<16x32xf32>
    %8 = arith.addf %0, %7 : vector<16x32xf32>
    %c0_5 = arith.constant 0 : index
    %c0_6 = arith.constant 0 : index
    %9 = vector.load %arg5[%c0_5, %c0_6] : memref<16x32xf32, #tpu.memory_space<vmem>>, vector<16x32xf32>
    tpu.vector_store %arg5[%c0_5, %c0_6], %8 {strides = array<i32>} : memref<16x32xf32, #tpu.memory_space<vmem>>, vector<16x32xf32>,
    %cst_7 = arith.constant 1.000000e+00 : f32
    %10 = vector.broadcast %cst_7 : f32 to vector<8x32xf32>
    %cst_8 = arith.constant dense<0.000000e+00> : vector<8x16xf32>
    %11 = tpu.matmul %10, %6, %cst_8 {dimension_numbers = #tpu.dot_dimension_numbers<[1], [1], [0], [0], [0, 0, 1, 0], [], []>} : vector<8x32xf32>, vector<16x32xf32>, vector<8x16xf32> -> vector<8x16xf32>
    %12 = vector.extract_strided_slice %11 {offsets = [0, 0], sizes = [1, 16], strides = [1, 1]} : vector<8x16xf32> to vector<1x16xf32>
    %cst_9 = arith.constant 3.125000e-02 : f32
    %13 = vector.broadcast %cst_9 : f32 to vector<1x16xf32>
    %14 = arith.mulf %12, %13 : vector<1x16xf32>
    %cst_10 = arith.constant 0.000000e+00 : f32
    %15 = vector.broadcast %cst_10 : f32 to vector<1x16xf32>
    %16 = arith.subf %15, %14 : vector<1x16xf32>
    %17 = math.exp %16 : vector<1x16xf32>
    %cst_11 = arith.constant 1.000000e+00 : f32
    %18 = vector.broadcast %cst_11 : f32 to vector<1x16xf32>
    %19 = arith.addf %18, %17 : vector<1x16xf32>
    %20 = tpu.reciprocal %19 : vector<1x16xf32> -> vector<1x16xf32>
    %c0_12 = arith.constant 0 : index
    %c0_13 = arith.constant 0 : index
    %21 = vector.load %arg2[%c0_12, %c0_13] : memref<3x16xf32, #tpu.memory_space<vmem>>, vector<3x16xf32>
    %22 = vector.broadcast %20 : vector<1x16xf32> to vector<3x16xf32>
    %23 = arith.mulf %21, %22 : vector<3x16xf32>
    %24 = arith.addf %21, %23 : vector<3x16xf32>
    %c0_14 = arith.constant 0 : index
    %c0_15 = arith.constant 0 : index
    %25 = vector.load %arg6[%c0_14, %c0_15] : memref<3x16xf32, #tpu.memory_space<vmem>>, vector<3x16xf32>
    tpu.vector_store %arg6[%c0_14, %c0_15], %24 {strides = array<i32>} : memref<3x16xf32, #tpu.memory_space<vmem>>, vector<3x16xf32>,
    return
  }
  func.func @transform_0(%arg0: i32) -> (i32, i32) {
    %c0_i32 = arith.constant 0 : i32
    %c0_i32_0 = arith.constant 0 : i32
    return %arg0, %c0_i32 : i32, i32
  }
  func.func @transform_1(%arg0: i32) -> (i32, i32) {
    %c0_i32 = arith.constant 0 : i32
    %c0_i32_0 = arith.constant 0 : i32
    return %c0_i32, %arg0 : i32, i32
  }
  func.func @transform_2(%arg0: i32) -> (i32, i32) {
    %c0_i32 = arith.constant 0 : i32
    %c0_i32_0 = arith.constant 0 : i32
    %c0_i32_1 = arith.constant 0 : i32
    return %c0_i32, %c0_i32_0 : i32, i32
  }
  func.func @transform_3(%arg0: i32) -> (i32, i32) {
    %c0_i32 = arith.constant 0 : i32
    %c0_i32_0 = arith.constant 0 : i32
    %c0_i32_1 = arith.constant 0 : i32
    return %c0_i32, %c0_i32_0 : i32, i32
  }
  func.func @transform_4(%arg0: i32) -> (i32, i32) {
    %c0_i32 = arith.constant 0 : i32
    %c0_i32_0 = arith.constant 0 : i32
    return %arg0, %c0_i32 : i32, i32
  }
  func.func @transform_5(%arg0: i32) -> (i32, i32) {
    %c0_i32 = arith.constant 0 : i32
    %c0_i32_0 = arith.constant 0 : i32
    return %c0_i32, %arg0 : i32, i32
  }
}

</mosaic_0001>

<llo_original>
// kernel: _residual_forward_impl.1
$region0: #{_residual_forward_impl.1}
  #allocation0 [shape = 'u32[]', space=smem, size = 0x4, offset = 0x4, fixed_abs, tag = 'smem constant byte address 0x4 - core index']
  #allocation1 [shape = 'u32[144,128]{1,0:T(1,128)}', space=vmem, size = 0x12000, scoped, tag = 'internal scratch']
  %s0 = inlined_call_operand.vmem [shape: f32[16,32], index: 0, kind: input, shape index: {}]
  %s1 = inlined_call_operand.vmem [shape: f32[3,16], index: 1, kind: input, shape index: {}]
  %s2 = inlined_call_operand.vmem [shape: bf16[32,32], index: 2, kind: input, shape index: {}]
  %s3 = inlined_call_operand.vmem [shape: f32[1,32], index: 3, kind: input, shape index: {}]
  %s4 = inlined_call_operand.hbm [shape: f32[16,32], index: 4, kind: output, shape index: {0}]
  %s5 = inlined_call_operand.vmem [shape: f32[3,16], index: 5, kind: output, shape index: {1}]
  %6 = xla_tuple %s4, %s5
  %s7 = sld [smem:[#allocation0]]
  $region34: #{_residual_forward_impl.1} parent=0
    _
  %s9 = ssub.s32 1, %s7
  %s10 = scalar_select 0, %s9, %s7
  $region1: #{_residual_forward_impl.1} parent=0
    #allocation2 [shape = 'u8[8192]{0}', space=vmem, size = 0x2000, scoped, tag = 'output window, operand 0, single buffered']
    #allocation3 [shape = 's32[1]{0}', space=sflag, size = 0x4, scoped, tag = 'scoped memory for _residual_forward_impl.1']
    %11 = vsyncpa [#allocation3], 0
    // Predicated region
    $region2: #{_residual_forward_impl.1} parent=1 // pred_check
      _
    $region3: #{_residual_forward_impl.1} parent=1 // pred_check_branch
      %13 = sbr.rel (0) target = $region5
    $region4: #{_residual_forward_impl.1} parent=1 // pred_region
      _
    $region5: #{_residual_forward_impl.1} parent=1 // pred_fallthru
      _
    // Predicated region
    $region6: #{_residual_forward_impl.1} parent=1 // pred_check
      _
    $region7: #{_residual_forward_impl.1} parent=1 // pred_check_branch
      %15 = sbr.rel (0) target = $region9
    $region8: #{_residual_forward_impl.1} parent=1 // pred_region
      _
    $region9: #{_residual_forward_impl.1} parent=1 // pred_fallthru
      _
    // Predicated region
    $region10: #{_residual_forward_impl.1} parent=1 // pred_check
      _
    $region11: #{_residual_forward_impl.1} parent=1 // pred_check_branch
      %17 = sbr.rel (0) target = $region13
    $region12: #{_residual_forward_impl.1} parent=1 // pred_region
      _
    $region13: #{_residual_forward_impl.1} parent=1 // pred_fallthru
      _
    // Predicated region
    $region14: #{_residual_forward_impl.1} parent=1 // pred_check
      _
    $region15: #{_residual_forward_impl.1} parent=1 // pred_check_branch
      %19 = sbr.rel (0) target = $region17
    $region16: #{_residual_forward_impl.1} parent=1 // pred_region
      _
    $region17: #{_residual_forward_impl.1} parent=1 // pred_fallthru
      _
    %v21 = vld [vmem:[%s0] sm:$0xff]
    %v22 = vld [vmem:[%s0 + $0x8] sm:$0xff]
    %v23 = vpack.c.bf16 %v22, %v21
    %v24 = vld [vmem:[%s2] sm:$0xf]
    %v25 = vld [vmem:[%s2 + $0x4] sm:$0xf]
    %v26 = vld [vmem:[%s2 + $0x8] sm:$0xf]
    %v27 = vld [vmem:[%s2 + $0xc] sm:$0xf]
    %v28 = vld [vmem:[%s3] sm:$0x1]
    %v30 = vlaneseq
    %v31 = vshrl.u32 %v30, 7
    %v32 = vsub.s32 0, %v31
    %v33 = vrot.slane %v28, %v32
    %v39 = vunpack.c.l.b16 %v24
    %v40 = vunpack.c.l.b16 %v25
    %v41 = vunpack.c.l.b16 %v26
    %v42 = vunpack.c.l.b16 %v27
    %v43 = vpack.c.b16 %v40, %v39
    %v44 = vpack.c.b16 %v42, %v41
    %vm47 = vcmask 261120
    %v49 = vsel %vm47, %v23, 0
    %51 = vmatprep.subr.bf16.mxu0 0
    %52 = vmatpush1.bf16.msra.mxu0 %v43
    %53 = vmatprep.subr.bf16.mxu0 0
    %54 = vmatpush1.bf16.msra.mxu0 %v44
    %55 = vmatprep.subr.bf16.mxu0 0
    %56 = vmatpush1.bf16.msra.mxu0 0
    %57 = vmatprep.subr.bf16.mxu0 0
    %58 = vmatpush1.bf16.msra.mxu0 0
    %59 = vmatprep.subr.bf16.mxu0 0
    %60 = vmatpush1.bf16.msra.mxu0 0
    %61 = vmatprep.subr.bf16.mxu0 0
    %62 = vmatpush1.bf16.msra.mxu0 0
    %63 = vmatprep.subr.bf16.mxu0 0
    %64 = vmatpush1.bf16.msra.mxu0 0
    %65 = vmatprep.subr.bf16.mxu0 0
    %66 = vmatpush1.bf16.msra.mxu0 0
    %67 = vmatprep.subr.bf16.mxu0 0
    %68 = vmatpush1.bf16.msra.mxu0 0
    %69 = vmatprep.subr.bf16.mxu0 0
    %70 = vmatpush1.bf16.msra.mxu0 0
    %71 = vmatprep.subr.bf16.mxu0 0
    %72 = vmatpush1.bf16.msra.mxu0 0
    %73 = vmatprep.subr.bf16.mxu0 0
    %74 = vmatpush1.bf16.msra.mxu0 0
    %75 = vmatprep.subr.bf16.mxu0 0
    %76 = vmatpush1.bf16.msra.mxu0 0
    %77 = vmatprep.subr.bf16.mxu0 0
    %78 = vmatpush1.bf16.msra.mxu0 0
    %79 = vmatprep.subr.bf16.mxu0 0
    %80 = vmatpush1.bf16.msra.mxu0 0
    %81 = vmatprep.subr.bf16.mxu0 0
    %82 = vmatpush1.bf16.msra.mxu0 0
    %83 = vmatprep.mubr.bf16.mxu0 0
    %84 = vmatmul.mubr.bf16.gmra.mrb[0].mxu0 %v49
    %v85 = vpop.f32.mrb[0].mxu0
    %v86 = vadd.f32 %v33, %v85
    %v87 = vpop.f32.mrb[0].mxu0
    %v88 = vpop.f32.mrb[0].mxu0
    %v89 = vadd.f32 %v33, %v88
    %v90 = vpop.f32.mrb[0].mxu0
    %91 = vdwg.mxu0
    %v92 = vtanh.pop %v86
    %v93 = vtanh.pop %v89
    %v94 = vadd.f32 %v21, %v92
    %v95 = vadd.f32 %v22, %v93
    %96 = vst.msk [vmem:[#allocation2] sm:$0xff] %vm47, %v94
    %97 = vst.msk [vmem:[#allocation2 + $0x8] sm:$0xff] %vm47, %v95
    %v99 = vsel %vm47, 1.0, 0
    %v102 = vsel %vm47, %v86, 0
    %v105 = vsel %vm47, %v89, 0
    %107 = vmatprep.subr.mxu0 0.0
    %108 = vmatpush1.xpose.msra.mxu0 %v102
    %109 = vmatprep.subr.mxu0 0.0
    %110 = vmatpush1.xpose.msra.mxu0 %v105
    %111 = vmatprep.subr.mxu0 0.0
    %112 = vmatpush1.xpose.msra.mxu0 0.0
    %113 = vmatprep.subr.mxu0 0.0
    %114 = vmatpush1.xpose.msra.mxu0 0.0
    %115 = vmatprep.subr.mxu0 0.0
    %116 = vmatpush1.xpose.msra.mxu0 0.0
    %117 = vmatprep.subr.mxu0 0.0
    %118 = vmatpush1.xpose.msra.mxu0 0.0
    %119 = vmatprep.subr.mxu0 0.0
    %120 = vmatpush1.xpose.msra.mxu0 0.0
    %121 = vmatprep.subr.mxu0 0.0
    %122 = vmatpush1.xpose.msra.mxu0 0.0
    %123 = vmatprep.subr.mxu0 0.0
    %124 = vmatpush1.xpose.msra.mxu0 0.0
    %125 = vmatprep.subr.mxu0 0.0
    %126 = vmatpush1.xpose.msra.mxu0 0.0
    %127 = vmatprep.subr.mxu0 0.0
    %128 = vmatpush1.xpose.msra.mxu0 0.0
    %129 = vmatprep.subr.mxu0 0.0
    %130 = vmatpush1.xpose.msra.mxu0 0.0
    %131 = vmatprep.subr.mxu0 0.0
    %132 = vmatpush1.xpose.msra.mxu0 0.0
    %133 = vmatprep.subr.mxu0 0.0
    %134 = vmatpush1.xpose.msra.mxu0 0.0
    %135 = vmatprep.subr.mxu0 0.0
    %136 = vmatpush1.xpose.msra.mxu0 0.0
    %137 = vmatprep.subr.mxu0 0.0
    %138 = vmatpush1.xpose.msra.mxu0 0.0
    %139 = vmatprep.subr.mxu0 0.0
    %140 = vmatpush1.xpose.msra.mxu0 0.0
    %141 = vmatprep.subr.mxu0 0.0
    %142 = vmatpush1.xpose.msra.mxu0 0.0
    %143 = vmatprep.subr.mxu0 0.0
    %144 = vmatpush1.xpose.msra.mxu0 0.0
    %145 = vmatprep.subr.mxu0 0.0
    %146 = vmatpush1.xpose.msra.mxu0 0.0
    %147 = vmatprep.subr.mxu0 0.0
    %148 = vmatpush1.xpose.msra.mxu0 0.0
    %149 = vmatprep.subr.mxu0 0.0
    %150 = vmatpush1.xpose.msra.mxu0 0.0
    %151 = vmatprep.subr.mxu0 0.0
    %152 = vmatpush1.xpose.msra.mxu0 0.0
    %153 = vmatprep.subr.mxu0 0.0
    %154 = vmatpush1.xpose.msra.mxu0 0.0
    %155 = vmatprep.subr.mxu0 0.0
    %156 = vmatpush1.xpose.msra.mxu0 0.0
    %157 = vmatprep.subr.mxu0 0.0
    %158 = vmatpush1.xpose.msra.mxu0 0.0
    %159 = vmatprep.subr.mxu0 0.0
    %160 = vmatpush1.xpose.msra.mxu0 0.0
    %161 = vmatprep.subr.mxu0 0.0
    %162 = vmatpush1.xpose.msra.mxu0 0.0
    %163 = vmatprep.subr.mxu0 0.0
    %164 = vmatpush1.xpose.msra.mxu0 0.0
    %165 = vmatprep.subr.mxu0 0.0
    %166 = vmatpush1.xpose.msra.mxu0 0.0
    %167 = vmatprep.subr.mxu0 0.0
    %168 = vmatpush1.xpose.msra.mxu0 0.0
    %169 = vmatprep.subr.mxu0 0.0
    %170 = vmatpush1.xpose.msra.mxu0 0.0
    %171 = vmatprep.mubr.f32.mxu0 0.0
    %172 = vmatmul.mubr.f32.gmra.mrb[0].mxu0 %v99
    %v173 = vpop.f32.mrb[0].mxu0
    %v174 = vadd.f32 0.0, %v173
    %v175 = vpop.f32.mrb[0].mxu0
    %176 = vdwg.mxu0
    %v177 = vmul.f32 %v174, 0.03125
    %v178 = vsub.f32 0.0, %v177
    %v179 = vmul.f32 %v178, 1.442695
    %v180 = vpow.pop %v179
    %v181 = vadd.f32 %v180, 1.0
    %v182 = vrcp.pop %v181
    %v183 = vld [vmem:[%s1] sm:$0x7]
    %v184 = vlaneseq
    %v185 = vshrl.u32 %v184, 7
    %v186 = vsub.s32 0, %v185
    %v187 = vrot.slane %v182, %v186
    %v188 = vmul.f32 %v183, %v187
    %v189 = vadd.f32 %v183, %v188
    %vm190 = vcmask 124928
    %191 = vst.msk [vmem:[%s5] sm:$0x7] %vm190, %v189
    // Predicated region
    $region18: #{_residual_forward_impl.1} parent=1 // pred_check
      _
    $region19: #{_residual_forward_impl.1} parent=1 // pred_check_branch
      %193 = sbr.rel (0) target = $region21
    $region20: #{_residual_forward_impl.1} parent=1 // pred_region
      %s195 = ssub.s32 256, 256
      %196 = vsyncadd [#allocation3], %s195
      %s197 = sshll.u32 [#allocation2], 4
      %s198 = int_to_ptr.vmem [resolvable:$true] %s197
      %203 = dma.vmem_to_hbm [thread:$0]  %s198, 256, %s4, [#allocation3], 128, 128, 8
    $region21: #{_residual_forward_impl.1} parent=1 // pred_fallthru
      _
    // Predicated region
    $region22: #{_residual_forward_impl.1} parent=1 // pred_check
      _
    $region23: #{_residual_forward_impl.1} parent=1 // pred_check_branch
      %205 = sbr.rel (0) target = $region25
    $region24: #{_residual_forward_impl.1} parent=1 // pred_region
      _
    $region25: #{_residual_forward_impl.1} parent=1 // pred_fallthru
      _
    // Predicated region
    $region26: #{_residual_forward_impl.1} parent=1 // pred_check
      _
    $region27: #{_residual_forward_impl.1} parent=1 // pred_check_branch
      %207 = sbr.rel (0) target = $region29
    $region28: #{_residual_forward_impl.1} parent=1 // pred_region
      %208 = dma.done [#allocation3], 256
    $region29: #{_residual_forward_impl.1} parent=1 // pred_fallthru
      _
    // Predicated region
    $region30: #{_residual_forward_impl.1} parent=1 // pred_check
      _
    $region31: #{_residual_forward_impl.1} parent=1 // pred_check_branch
      %210 = sbr.rel (0) target = $region33
    $region32: #{_residual_forward_impl.1} parent=1 // pred_region
      _
    $region33: #{_residual_forward_impl.1} parent=1 // pred_fallthru
      _
    %211 = vsyncpa [#allocation3], 1

</llo_original>
